<compile_context>
chip_gen: v7x
topology: tpu7x:2x2x1
jax: 0.10.0
libtpu: 0.0.40
codegen_flags: <defaults>
</compile_context>

<pallas_src>
import jax
import jax.numpy as jnp
from jax.experimental import pallas as pl
from jax.experimental.pallas import tpu as pltpu


def _bent_id_kernel(x_ref, o_ref):
    x = x_ref[...]
    xf = x.astype(jnp.float32)
    y = xf + (jnp.sqrt(xf * xf + 1.0) - 1.0) * 0.5
    o_ref[...] = y.astype(o_ref.dtype)


def bent_id(x, *, target_block_bytes=2 * 1024 * 1024):
    orig_shape = x.shape
    orig_dtype = x.dtype
    n = x.size
    itemsize = jnp.dtype(orig_dtype).itemsize

    # Widest lane-dense column count that divides n -> no padding needed.
    cols = None
    for c in (1024, 512, 256, 128):
        if n % c == 0:
            cols = c
            break

    padded = cols is None
    if padded:
        cols = 128
        n_padded = pl.cdiv(n, cols) * cols
        x_flat = jnp.pad(jnp.ravel(x), (0, n_padded - n))
    else:
        x_flat = jnp.ravel(x)  # contiguous ravel/reshape: free metadata

    rows = x_flat.size // cols
    x2d = x_flat.reshape(rows, cols)

    # ~target_block_bytes per block, multiple of 8 sublanes, no bigger than the
    # (sublane-rounded) row extent of the array.
    tile_rows = max(8, (target_block_bytes // (cols * itemsize)) // 8 * 8)
    tile_rows = min(tile_rows, pl.cdiv(rows, 8) * 8)

    grid = (pl.cdiv(rows, tile_rows),)  # ragged last block handled by Pallas

    cost = pl.CostEstimate(
        flops=5 * n,
        transcendentals=n,
        bytes_accessed=2 * n * itemsize,
    )

    out2d = pl.pallas_call(
        _bent_id_kernel,
        out_shape=jax.ShapeDtypeStruct((rows, cols), orig_dtype),
        grid_spec=pltpu.PrefetchScalarGridSpec(
            num_scalar_prefetch=0,
            grid=grid,
            in_specs=[pl.BlockSpec((tile_rows, cols), lambda i: (i, 0))],
            out_specs=pl.BlockSpec((tile_rows, cols), lambda i: (i, 0)),
        ),
        compiler_params=pltpu.CompilerParams(
            dimension_semantics=("parallel",),
            vmem_limit_bytes=32 * 1024 * 1024,
        ),
        cost_estimate=cost,
    )(x2d)

    if padded:
        return out2d.reshape(-1)[:n].reshape(orig_shape)
    return out2d.reshape(orig_shape)


def bent_id_ref(x):
    xf = x.astype(jnp.float32)
    return (xf + (jnp.sqrt(xf * xf + 1.0) - 1.0) / 2.0).astype(x.dtype)


if __name__ == "__main__":
    key = jax.random.PRNGKey(0)
    x = jax.random.normal(key, (2, 4, 16, 16), dtype=jnp.float32)

    out = bent_id(x)
    out = jax.block_until_ready(out)

    ref = bent_id_ref(x)
    assert out.shape == x.shape and out.dtype == x.dtype
    assert jnp.allclose(out, ref, atol=1e-6, rtol=1e-6)

    # Also check a size that is NOT a multiple of 128 (padded fallback path).
    x2 = jax.random.normal(jax.random.PRNGKey(1), (3, 5, 7, 11), dtype=jnp.float32)
    out2 = jax.block_until_ready(bent_id(x2))
    assert jnp.allclose(out2, bent_id_ref(x2), atol=1e-6, rtol=1e-6)

    print("KERNEL_OK")
</pallas_src>

<mosaic_0001>
module attributes {stable_mosaic.version = 11 : i64} {
  func.func @_bent_id_kernel(%arg0: i32, %arg1: memref<8x1024xf32, #tpu.memory_space<vmem>>, %arg2: memref<8x1024xf32, #tpu.memory_space<vmem>>) attributes {dimension_semantics = [#tpu.dimension_semantics<parallel>], iteration_bounds = array<i64: 1>, scalar_prefetch = 0 : i64, scratch_operands = 0 : i64, tpu.core_type = #tpu.core_type<tc>, window_params = [{transform_indices = @transform_0, window_bounds = array<i64: 8, 1024>}, {transform_indices = @transform_1, window_bounds = array<i64: 8, 1024>}]} {
    %c0 = arith.constant 0 : index
    %c0_0 = arith.constant 0 : index
    %0 = vector.load %arg1[%c0, %c0_0] : memref<8x1024xf32, #tpu.memory_space<vmem>>, vector<8x1024xf32>
    %1 = arith.mulf %0, %0 : vector<8x1024xf32>
    %cst = arith.constant 1.000000e+00 : f32
    %2 = vector.broadcast %cst : f32 to vector<8x1024xf32>
    %3 = arith.addf %1, %2 : vector<8x1024xf32>
    %4 = math.sqrt %3 : vector<8x1024xf32>
    %cst_1 = arith.constant 1.000000e+00 : f32
    %5 = vector.broadcast %cst_1 : f32 to vector<8x1024xf32>
    %6 = arith.subf %4, %5 : vector<8x1024xf32>
    %cst_2 = arith.constant 5.000000e-01 : f32
    %7 = vector.broadcast %cst_2 : f32 to vector<8x1024xf32>
    %8 = arith.mulf %6, %7 : vector<8x1024xf32>
    %9 = arith.addf %0, %8 : vector<8x1024xf32>
    %c0_3 = arith.constant 0 : index
    %c0_4 = arith.constant 0 : index
    %10 = vector.load %arg2[%c0_3, %c0_4] : memref<8x1024xf32, #tpu.memory_space<vmem>>, vector<8x1024xf32>
    tpu.vector_store %arg2[%c0_3, %c0_4], %9 {strides = array<i32>} : memref<8x1024xf32, #tpu.memory_space<vmem>>, vector<8x1024xf32>,
    return
  }
  func.func @transform_0(%arg0: i32) -> (i32, i32) {
    %c0_i32 = arith.constant 0 : i32
    %c0_i32_0 = arith.constant 0 : i32
    return %arg0, %c0_i32 : i32, i32
  }
  func.func @transform_1(%arg0: i32) -> (i32, i32) {
    %c0_i32 = arith.constant 0 : i32
    %c0_i32_0 = arith.constant 0 : i32
    return %arg0, %c0_i32 : i32, i32
  }
}

</mosaic_0001>

<llo_original>
// kernel: tpu_custom_call.1
$region0: #{tpu_custom_call.1}
  #allocation0 [shape = 'u32[]', space=smem, size = 0x4, offset = 0x4, fixed_abs, tag = 'smem constant byte address 0x4 - core index']
  #allocation1 [shape = 'u32[144,128]{1,0:T(1,128)}', space=vmem, size = 0x12000, scoped, tag = 'internal scratch']
  %s0 = inlined_call_operand.hbm [shape: f32[2,1024], index: 0, kind: input, shape index: {}]
  %s1 = inlined_call_operand.hbm [shape: f32[2,1024], index: 1, kind: output, shape index: {}]
  %s2 = sld [smem:[#allocation0]]
  $region18: #{tpu_custom_call.1} parent=0
    _
  %s4 = ssub.s32 1, %s2
  %s5 = scalar_select 0, %s4, %s2
  $region1: #{tpu_custom_call.1} parent=0
    #allocation2 [shape = 'u8[32768]{0}', space=vmem, size = 0x8000, scoped, tag = 'input window, operand 0, single buffered']
    #allocation3 [shape = 's32[1]{0}', space=sflag, size = 0x4, scoped, tag = 'scoped memory for tpu_custom_call.1']
    #allocation4 [shape = 's32[1]{0}', space=sflag, size = 0x4, scoped, tag = 'scoped memory for tpu_custom_call.1']
    #allocation5 [shape = 'u8[32768]{0}', space=vmem, size = 0x8000, scoped, tag = 'output window, operand 0, single buffered']
    %6 = vsyncpa [#allocation3], 0
    %7 = vsyncpa [#allocation4], 0
    // Predicated region
    $region2: #{tpu_custom_call.1} parent=1 // pred_check
      _
    $region3: #{tpu_custom_call.1} parent=1 // pred_check_branch
      %9 = sbr.rel (0) target = $region5
    $region4: #{tpu_custom_call.1} parent=1 // pred_region
      %s11 = ssub.s32 1024, 256
      %12 = vsyncadd [#allocation3], %s11
      %s13 = sshll.u32 [#allocation2], 4
      %s14 = int_to_ptr.vmem [resolvable:$true] %s13
      %19 = dma.hbm_to_vmem [thread:$0]  %s0, 256, %s14, [#allocation3], 256, 256, 16
    $region5: #{tpu_custom_call.1} parent=1 // pred_fallthru
      _
    // Predicated region
    $region6: #{tpu_custom_call.1} parent=1 // pred_check
      _
    $region7: #{tpu_custom_call.1} parent=1 // pred_check_branch
      %21 = sbr.rel (0) target = $region9
    $region8: #{tpu_custom_call.1} parent=1 // pred_region
      %22 = dma.done [#allocation3], 1024
    $region9: #{tpu_custom_call.1} parent=1 // pred_fallthru
      _
    %v23 = vld [vmem:[#allocation2] sm:$0xff]
    %v24 = vld [vmem:[#allocation2 + $0x8] sm:$0xff]
    %v25 = vld [vmem:[#allocation2 + $0x10] sm:$0xff]
    %v26 = vld [vmem:[#allocation2 + $0x18] sm:$0xff]
    %v27 = vld [vmem:[#allocation2 + $0x20] sm:$0xff]
    %v28 = vld [vmem:[#allocation2 + $0x28] sm:$0xff]
    %v29 = vld [vmem:[#allocation2 + $0x30] sm:$0xff]
    %v30 = vld [vmem:[#allocation2 + $0x38] sm:$0xff]
    %v31 = vmul.f32 %v23, %v23
    %v32 = vmul.f32 %v24, %v24
    %v33 = vmul.f32 %v25, %v25
    %v34 = vmul.f32 %v26, %v26
    %v35 = vmul.f32 %v27, %v27
    %v36 = vmul.f32 %v28, %v28
    %v37 = vmul.f32 %v29, %v29
    %v38 = vmul.f32 %v30, %v30
    %v39 = vadd.f32 %v31, 1.0
    %v40 = vadd.f32 %v32, 1.0
    %v41 = vadd.f32 %v33, 1.0
    %v42 = vadd.f32 %v34, 1.0
    %v43 = vadd.f32 %v35, 1.0
    %v44 = vadd.f32 %v36, 1.0
    %v45 = vadd.f32 %v37, 1.0
    %v46 = vadd.f32 %v38, 1.0
    %v47 = vrsqrt.pop %v39
    %v48 = vmul.f32 %v39, %v47
    %vm49 = vcmp.eq.f32.partialorder %v39, inf
    %v50 = vsel %vm49, %v39, %v48
    %vm51 = vcmp.eq.f32.partialorder %v39, 0.0
    %v52 = vand.u32 %v39, 2147483648
    %v53 = vsel %vm51, %v52, %v50
    %v54 = vrsqrt.pop %v40
    %v55 = vmul.f32 %v40, %v54
    %vm56 = vcmp.eq.f32.partialorder %v40, inf
    %v57 = vsel %vm56, %v40, %v55
    %vm58 = vcmp.eq.f32.partialorder %v40, 0.0
    %v59 = vand.u32 %v40, 2147483648
    %v60 = vsel %vm58, %v59, %v57
    %v61 = vrsqrt.pop %v41
    %v62 = vmul.f32 %v41, %v61
    %vm63 = vcmp.eq.f32.partialorder %v41, inf
    %v64 = vsel %vm63, %v41, %v62
    %vm65 = vcmp.eq.f32.partialorder %v41, 0.0
    %v66 = vand.u32 %v41, 2147483648
    %v67 = vsel %vm65, %v66, %v64
    %v68 = vrsqrt.pop %v42
    %v69 = vmul.f32 %v42, %v68
    %vm70 = vcmp.eq.f32.partialorder %v42, inf
    %v71 = vsel %vm70, %v42, %v69
    %vm72 = vcmp.eq.f32.partialorder %v42, 0.0
    %v73 = vand.u32 %v42, 2147483648
    %v74 = vsel %vm72, %v73, %v71
    %v75 = vrsqrt.pop %v43
    %v76 = vmul.f32 %v43, %v75
    %vm77 = vcmp.eq.f32.partialorder %v43, inf
    %v78 = vsel %vm77, %v43, %v76
    %vm79 = vcmp.eq.f32.partialorder %v43, 0.0
    %v80 = vand.u32 %v43, 2147483648
    %v81 = vsel %vm79, %v80, %v78
    %v82 = vrsqrt.pop %v44
    %v83 = vmul.f32 %v44, %v82
    %vm84 = vcmp.eq.f32.partialorder %v44, inf
    %v85 = vsel %vm84, %v44, %v83
    %vm86 = vcmp.eq.f32.partialorder %v44, 0.0
    %v87 = vand.u32 %v44, 2147483648
    %v88 = vsel %vm86, %v87, %v85
    %v89 = vrsqrt.pop %v45
    %v90 = vmul.f32 %v45, %v89
    %vm91 = vcmp.eq.f32.partialorder %v45, inf
    %v92 = vsel %vm91, %v45, %v90
    %vm93 = vcmp.eq.f32.partialorder %v45, 0.0
    %v94 = vand.u32 %v45, 2147483648
    %v95 = vsel %vm93, %v94, %v92
    %v96 = vrsqrt.pop %v46
    %v97 = vmul.f32 %v46, %v96
    %vm98 = vcmp.eq.f32.partialorder %v46, inf
    %v99 = vsel %vm98, %v46, %v97
    %vm100 = vcmp.eq.f32.partialorder %v46, 0.0
    %v101 = vand.u32 %v46, 2147483648
    %v102 = vsel %vm100, %v101, %v99
    %v103 = vsub.f32 %v53, 1.0
    %v104 = vsub.f32 %v60, 1.0
    %v105 = vsub.f32 %v67, 1.0
    %v106 = vsub.f32 %v74, 1.0
    %v107 = vsub.f32 %v81, 1.0
    %v108 = vsub.f32 %v88, 1.0
    %v109 = vsub.f32 %v95, 1.0
    %v110 = vsub.f32 %v102, 1.0
    %v111 = vmul.f32 %v103, 0.5
    %v112 = vmul.f32 %v104, 0.5
    %v113 = vmul.f32 %v105, 0.5
    %v114 = vmul.f32 %v106, 0.5
    %v115 = vmul.f32 %v107, 0.5
    %v116 = vmul.f32 %v108, 0.5
    %v117 = vmul.f32 %v109, 0.5
    %v118 = vmul.f32 %v110, 0.5
    %v119 = vadd.f32 %v23, %v111
    %v120 = vadd.f32 %v24, %v112
    %v121 = vadd.f32 %v25, %v113
    %v122 = vadd.f32 %v26, %v114
    %v123 = vadd.f32 %v27, %v115
    %v124 = vadd.f32 %v28, %v116
    %v125 = vadd.f32 %v29, %v117
    %v126 = vadd.f32 %v30, %v118
    %127 = vst [vmem:[#allocation5] sm:$0xff] %v119
    %128 = vst [vmem:[#allocation5 + $0x8] sm:$0xff] %v120
    %129 = vst [vmem:[#allocation5 + $0x10] sm:$0xff] %v121
    %130 = vst [vmem:[#allocation5 + $0x18] sm:$0xff] %v122
    %131 = vst [vmem:[#allocation5 + $0x20] sm:$0xff] %v123
    %132 = vst [vmem:[#allocation5 + $0x28] sm:$0xff] %v124
    %133 = vst [vmem:[#allocation5 + $0x30] sm:$0xff] %v125
    %134 = vst [vmem:[#allocation5 + $0x38] sm:$0xff] %v126
    // Predicated region
    $region10: #{tpu_custom_call.1} parent=1 // pred_check
      _
    $region11: #{tpu_custom_call.1} parent=1 // pred_check_branch
      %136 = sbr.rel (0) target = $region13
    $region12: #{tpu_custom_call.1} parent=1 // pred_region
      %s138 = ssub.s32 1024, 256
      %139 = vsyncadd [#allocation4], %s138
      %s140 = sshll.u32 [#allocation5], 4
      %s141 = int_to_ptr.vmem [resolvable:$true] %s140
      %146 = dma.vmem_to_hbm [thread:$0]  %s141, 256, %s1, [#allocation4], 256, 256, 16
    $region13: #{tpu_custom_call.1} parent=1 // pred_fallthru
      _
    // Predicated region
    $region14: #{tpu_custom_call.1} parent=1 // pred_check
      _
    $region15: #{tpu_custom_call.1} parent=1 // pred_check_branch
      %148 = sbr.rel (0) target = $region17
    $region16: #{tpu_custom_call.1} parent=1 // pred_region
      %149 = dma.done [#allocation4], 1024
    $region17: #{tpu_custom_call.1} parent=1 // pred_fallthru
      _
    %150 = vsyncpa [#allocation3], 1
    %151 = vsyncpa [#allocation4], 1

</llo_original>
